<compile_context>
chip_gen: v6e
topology: v6e:2x2x1
jax: 0.10.0
libtpu: 0.0.40
codegen_flags: <defaults>
</compile_context>

<pallas_src>
import functools

import jax
import jax.numpy as jnp
from jax.experimental import pallas as pl
from jax.experimental.pallas import tpu as pltpu


def _ls_ce_kernel(logits_ref, tgt_ref, smooth_ref, nll_ref, cnt_ref,
                  *, ignore_index, n, c, tile_n, tiles_per_split):
    j = pl.program_id(0)   # parallel split (one per TensorCore on v7x)
    i = pl.program_id(1)   # row-tile index within the split (reduction axis)

    @pl.when(i == 0)
    def _():
        smooth_ref[...] = jnp.zeros_like(smooth_ref)
        nll_ref[...] = jnp.zeros_like(nll_ref)
        cnt_ref[...] = jnp.zeros_like(cnt_ref)

    x = logits_ref[...].astype(jnp.float32)                 # (tile_n, c)
    tgt = tgt_ref[...]                                      # (tile_n, 1) int32

    # per-row logsumexp (single exp per element; log only per row)
    m = jnp.max(x, axis=-1, keepdims=True)                  # (tile_n, 1)
    z = jnp.sum(jnp.exp(x - m), axis=-1, keepdims=True)     # (tile_n, 1)
    lse = m + jnp.log(z)                                    # (tile_n, 1)
    s = jnp.sum(x, axis=-1, keepdims=True)                  # (tile_n, 1)

    # -sum_c log_softmax(x)_c = C * lse - sum_c x   (no (tile_n, c) logp temp)
    row_neg_sum = jnp.float32(c) * lse - s                  # (tile_n, 1)

    # gather x[i, t_i] with a one-hot mask; ignore_index never matches a class
    cls = jax.lax.broadcasted_iota(jnp.int32, x.shape, 1)   # (tile_n, c)
    picked_x = jnp.sum(jnp.where(cls == tgt, x, 0.0),
                       axis=-1, keepdims=True)              # (tile_n, 1)
    picked_logp = picked_x - lse                            # log_softmax[i, t_i]

    # mask rows past N (partial last tile / over-allocated split tiles);
    # jnp.where is a select, so NaN/Inf from padded rows cannot propagate.
    local = jax.lax.broadcasted_iota(jnp.int32, (tile_n, 1), 0)
    global_row = (j * tiles_per_split + i) * tile_n + local
    row_valid = global_row < n
    valid = jnp.logical_and(row_valid, tgt != ignore_index)

    smooth_c = jnp.sum(jnp.where(row_valid, row_neg_sum, 0.0),
                       axis=0, keepdims=True)               # (1, 1)
    nll_c = jnp.sum(jnp.where(valid, -picked_logp, 0.0),
                    axis=0, keepdims=True)                  # (1, 1)
    cnt_c = jnp.sum(jnp.where(valid, 1.0, 0.0),
                    axis=0, keepdims=True)                  # (1, 1)

    # outputs are resident accumulators across the "arbitrary" i axis
    smooth_ref[...] += smooth_c.reshape(1, 1, 1)
    nll_ref[...] += nll_c.reshape(1, 1, 1)
    cnt_ref[...] += cnt_c.reshape(1, 1, 1)


def _choose_tile_n(n, c):
    # Budget the FP32 in-kernel footprint (upcast tile + exp/iota/select temps
    # are the dominant VMEM users): keep one f32 tile at ~2 MiB, cap at 2048
    # rows, multiple of 8 (sublane).  For small classification-sized C this
    # gives 2048-row tiles (4x the previous 512-row cap), amortizing the
    # ~0.35 us per-grid-step overhead; for large C it shrinks automatically.
    f32_budget = 2 * 1024 * 1024
    t = f32_budget // max(1, c * 4)
    t = max(8, min(2048, (t // 8) * 8))
    return n if n <= t else t


def label_smoothing_cross_entropy(logits, target, eps=0.1, ignore_index=-100,
                                  tile_n=None):
    """Pallas forward of LabelSmoothingCrossEntropy(eps, 'mean', ignore_index)."""
    n, c = logits.shape
    tgt2 = target.reshape(n, 1).astype(jnp.int32)
    itemsize = jnp.dtype(logits.dtype).itemsize

    if tile_n is None:
        tile_n = _choose_tile_n(n, c)
    tile_n = min(tile_n, n)
    n_tiles = pl.cdiv(n, tile_n)
    num_splits = 2 if n_tiles >= 2 else 1       # v7x: one split per TensorCore
    tiles_per_split = pl.cdiv(n_tiles, num_splits)

    def row_block(j, i):
        # Clamp so over-allocated split tiles stay in bounds; their rows are
        # masked out in the kernel via the global-row iota.
        return (jnp.minimum(j * tiles_per_split + i, n_tiles - 1), 0)

    kernel = functools.partial(
        _ls_ce_kernel, ignore_index=int(ignore_index), n=n, c=c,
        tile_n=tile_n, tiles_per_split=tiles_per_split)

    # double-buffered native-dtype input + generous headroom for f32 temps.
    vmem_limit = int(min(64 * 1024 * 1024,
                         max(4 * 1024 * 1024,
                             2 * tile_n * c * itemsize
                             + 8 * tile_n * c * 4
                             + 2 * 1024 * 1024)))

    cost = pl.CostEstimate(
        flops=5 * n * c,
        transcendentals=n * c + n,
        bytes_accessed=n * c * itemsize + n * 4 + 3 * num_splits * 4)

    part_shape = jax.ShapeDtypeStruct((num_splits, 1, 1), jnp.float32)
    part_spec = pl.BlockSpec((1, 1, 1), lambda j, i: (j, 0, 0))

    smooth_p, nll_p, cnt_p = pl.pallas_call(
        kernel,
        out_shape=(part_shape, part_shape, part_shape),
        grid_spec=pltpu.PrefetchScalarGridSpec(
            num_scalar_prefetch=0,
            grid=(num_splits, tiles_per_split),
            in_specs=[pl.BlockSpec((tile_n, c), row_block),
                      pl.BlockSpec((tile_n, 1), row_block)],
            out_specs=(part_spec, part_spec, part_spec)),
        compiler_params=pltpu.CompilerParams(
            dimension_semantics=("parallel", "arbitrary"),
            vmem_limit_bytes=vmem_limit),
        cost_estimate=cost,
    )(logits, tgt2)

    smooth_sum = jnp.sum(smooth_p)
    nll_sum = jnp.sum(nll_p)
    count = jnp.sum(cnt_p)
    # smoothing mean divides by ALL rows (torch does not honor ignore_index there);
    # count == 0 -> NaN, matching torch nll_loss(reduction='mean') semantics.
    smooth_mean = smooth_sum / jnp.float32(n)
    nll_mean = nll_sum / count
    return smooth_mean * (eps / float(c)) + (1.0 - eps) * nll_mean


def _reference(logits, target, eps=0.1, ignore_index=-100):
    logits = logits.astype(jnp.float32)
    logp = jax.nn.log_softmax(logits, axis=-1)
    smooth = (-logp.sum(axis=-1)).mean()
    valid = target != ignore_index
    safe_t = jnp.where(valid, target, 0)
    picked = jnp.take_along_axis(logp, safe_t[:, None], axis=-1)[:, 0]
    nll = jnp.sum(jnp.where(valid, -picked, 0.0)) / jnp.sum(valid)
    c = logits.shape[-1]
    return smooth * eps / c + (1.0 - eps) * nll


if __name__ == "__main__":
    key = jax.random.PRNGKey(0)
    k1, k2, k3, k4 = jax.random.split(key, 4)

    # Small case: single tile, single split, f32 input.
    N1, C1 = 8, 32
    logits1 = jax.random.normal(k1, (N1, C1), dtype=jnp.float32)
    target1 = jax.random.randint(k2, (N1,), 0, C1, dtype=jnp.int32)
    target1 = target1.at[3].set(-100)          # exercise ignore_index
    loss1 = jax.block_until_ready(label_smoothing_cross_entropy(logits1, target1))
    ref1 = jax.block_until_ready(_reference(logits1, target1))
    assert jnp.allclose(loss1, ref1, rtol=1e-5, atol=1e-5), (loss1, ref1)

    # Larger case: bf16 input (native dtype, no host upcast).  Force a small
    # tile so the multi-tile grid, the partial last tile, and the 2-way
    # parallel split (with its masked over-allocated tile) are all exercised.
    N2, C2 = 1040, 32
    logits2 = jax.random.normal(k3, (N2, C2), dtype=jnp.float32).astype(jnp.bfloat16)
    target2 = jax.random.randint(k4, (N2,), 0, C2, dtype=jnp.int32)
    target2 = target2.at[7].set(-100)
    loss2 = jax.block_until_ready(
        label_smoothing_cross_entropy(logits2, target2, tile_n=128))
    ref2 = jax.block_until_ready(_reference(logits2, target2))
    assert jnp.allclose(loss2, ref2, rtol=1e-3, atol=1e-3), (loss2, ref2)

    # Same large case through the default (auto) tile size — single big tile.
    loss3 = jax.block_until_ready(label_smoothing_cross_entropy(logits2, target2))
    assert jnp.allclose(loss3, ref2, rtol=1e-3, atol=1e-3), (loss3, ref2)

    print("KERNEL_OK")
</pallas_src>

<mosaic_0001>
module attributes {stable_mosaic.version = 11 : i64} {
  func.func @_ls_ce_kernel(%arg0: i32, %arg1: i32, %arg2: memref<8x32xf32, #tpu.memory_space<vmem>>, %arg3: memref<8x1xi32, #tpu.memory_space<vmem>>, %arg4: memref<1x1x1xf32, #tpu.memory_space<vmem>>, %arg5: memref<1x1x1xf32, #tpu.memory_space<vmem>>, %arg6: memref<1x1x1xf32, #tpu.memory_space<vmem>>) attributes {dimension_semantics = [#tpu.dimension_semantics<parallel>, #tpu.dimension_semantics<arbitrary>], iteration_bounds = array<i64: 1, 1>, scalar_prefetch = 0 : i64, scratch_operands = 0 : i64, tpu.core_type = #tpu.core_type<tc>, window_params = [{transform_indices = @transform_0, window_bounds = array<i64: 8, 32>}, {transform_indices = @transform_1, window_bounds = array<i64: 8, 1>}, {transform_indices = @transform_2, window_bounds = array<i64: 1, 1, 1>}, {transform_indices = @transform_3, window_bounds = array<i64: 1, 1, 1>}, {transform_indices = @transform_4, window_bounds = array<i64: 1, 1, 1>}]} {
    %c0_i32 = arith.constant 0 : i32
    %0 = arith.cmpi eq, %arg1, %c0_i32 : i32
    %1 = arith.extui %0 : i1 to i32
    %c0_i32_0 = arith.constant 0 : i32
    %2 = arith.cmpi ne, %1, %c0_i32_0 : i32
    scf.if %2 {
      %cst_36 = arith.constant 0.000000e+00 : f32
      %65 = vector.broadcast %cst_36 : f32 to vector<1x1x1xf32>
      %c0_37 = arith.constant 0 : index
      %c0_38 = arith.constant 0 : index
      %c0_39 = arith.constant 0 : index
      %66 = vector.load %arg4[%c0_37, %c0_38, %c0_39] : memref<1x1x1xf32, #tpu.memory_space<vmem>>, vector<1x1x1xf32>
      tpu.vector_store %arg4[%c0_37, %c0_38, %c0_39], %65 {strides = array<i32>} : memref<1x1x1xf32, #tpu.memory_space<vmem>>, vector<1x1x1xf32>,
      %cst_40 = arith.constant 0.000000e+00 : f32
      %67 = vector.broadcast %cst_40 : f32 to vector<1x1x1xf32>
      %c0_41 = arith.constant 0 : index
      %c0_42 = arith.constant 0 : index
      %c0_43 = arith.constant 0 : index
      %68 = vector.load %arg5[%c0_41, %c0_42, %c0_43] : memref<1x1x1xf32, #tpu.memory_space<vmem>>, vector<1x1x1xf32>
      tpu.vector_store %arg5[%c0_41, %c0_42, %c0_43], %67 {strides = array<i32>} : memref<1x1x1xf32, #tpu.memory_space<vmem>>, vector<1x1x1xf32>,
      %cst_44 = arith.constant 0.000000e+00 : f32
      %69 = vector.broadcast %cst_44 : f32 to vector<1x1x1xf32>
      %c0_45 = arith.constant 0 : index
      %c0_46 = arith.constant 0 : index
      %c0_47 = arith.constant 0 : index
      %70 = vector.load %arg6[%c0_45, %c0_46, %c0_47] : memref<1x1x1xf32, #tpu.memory_space<vmem>>, vector<1x1x1xf32>
      tpu.vector_store %arg6[%c0_45, %c0_46, %c0_47], %69 {strides = array<i32>} : memref<1x1x1xf32, #tpu.memory_space<vmem>>, vector<1x1x1xf32>,
    } else {
    }
    %c0 = arith.constant 0 : index
    %c0_1 = arith.constant 0 : index
    %3 = vector.load %arg2[%c0, %c0_1] : memref<8x32xf32, #tpu.memory_space<vmem>>, vector<8x32xf32>
    %c0_2 = arith.constant 0 : index
    %c0_3 = arith.constant 0 : index
    %4 = vector.load %arg3[%c0_2, %c0_3] : memref<8x1xi32, #tpu.memory_space<vmem>>, vector<8x1xi32>
    %cst = arith.constant dense<0xFF800000> : vector<8xf32>
    %5 = vector.multi_reduction <maximumf>, %3, %cst [1] : vector<8x32xf32> to vector<8xf32>
    %6 = vector.shape_cast %5 : vector<8xf32> to vector<8x1xf32>
    %7 = vector.broadcast %6 : vector<8x1xf32> to vector<8x32xf32>
    %8 = arith.subf %3, %7 : vector<8x32xf32>
    %9 = math.exp %8 : vector<8x32xf32>
    %cst_4 = arith.constant dense<0.000000e+00> : vector<8xf32>
    %10 = vector.multi_reduction <add>, %9, %cst_4 [1] : vector<8x32xf32> to vector<8xf32>
    %11 = vector.shape_cast %10 : vector<8xf32> to vector<8x1xf32>
    %12 = math.log %11 : vector<8x1xf32>
    %13 = arith.addf %6, %12 : vector<8x1xf32>
    %cst_5 = arith.constant dense<0.000000e+00> : vector<8xf32>
    %14 = vector.multi_reduction <add>, %3, %cst_5 [1] : vector<8x32xf32> to vector<8xf32>
    %15 = vector.shape_cast %14 : vector<8xf32> to vector<8x1xf32>
    %cst_6 = arith.constant 3.200000e+01 : f32
    %16 = vector.broadcast %cst_6 : f32 to vector<8x1xf32>
    %17 = arith.mulf %16, %13 : vector<8x1xf32>
    %18 = arith.subf %17, %15 : vector<8x1xf32>
    %19 = tpu.iota {dimensions = array<i32: 1>} : vector<8x32xi32>
    %20 = vector.broadcast %4 : vector<8x1xi32> to vector<8x32xi32>
    %21 = arith.cmpi eq, %19, %20 : vector<8x32xi32>
    %cst_7 = arith.constant 0.000000e+00 : f32
    %22 = vector.broadcast %cst_7 : f32 to vector<8x32xf32>
    %23 = arith.select %21, %3, %22 : vector<8x32xi1>, vector<8x32xf32>
    %cst_8 = arith.constant dense<0.000000e+00> : vector<8xf32>
    %24 = vector.multi_reduction <add>, %23, %cst_8 [1] : vector<8x32xf32> to vector<8xf32>
    %25 = vector.shape_cast %24 : vector<8xf32> to vector<8x1xf32>
    %26 = arith.subf %25, %13 : vector<8x1xf32>
    %27 = tpu.iota {dimensions = array<i32: 0>} : vector<8x1xi32>
    %c1_i32 = arith.constant 1 : i32
    %28 = arith.muli %arg0, %c1_i32 : i32
    %29 = arith.addi %28, %arg1 : i32
    %c8_i32 = arith.constant 8 : i32
    %30 = arith.muli %29, %c8_i32 : i32
    %31 = vector.broadcast %30 : i32 to vector<8x1xi32>
    %32 = arith.addi %31, %27 : vector<8x1xi32>
    %c8_i32_9 = arith.constant 8 : i32
    %33 = vector.broadcast %c8_i32_9 : i32 to vector<8x1xi32>
    %34 = arith.cmpi slt, %32, %33 : vector<8x1xi32>
    %c-100_i32 = arith.constant -100 : i32
    %35 = vector.broadcast %c-100_i32 : i32 to vector<8x1xi32>
    %36 = arith.cmpi ne, %4, %35 : vector<8x1xi32>
    %37 = arith.andi %34, %36 : vector<8x1xi1>
    %cst_10 = arith.constant 0.000000e+00 : f32
    %38 = vector.broadcast %cst_10 : f32 to vector<8x1xf32>
    %39 = arith.select %34, %18, %38 : vector<8x1xi1>, vector<8x1xf32>
    %cst_11 = arith.constant dense<0.000000e+00> : vector<1xf32>
    %40 = vector.multi_reduction <add>, %39, %cst_11 [0] : vector<8x1xf32> to vector<1xf32>
    %41 = vector.shape_cast %40 : vector<1xf32> to vector<1x1xf32>
    %cst_12 = arith.constant 0.000000e+00 : f32
    %42 = vector.broadcast %cst_12 : f32 to vector<8x1xf32>
    %43 = arith.subf %42, %26 : vector<8x1xf32>
    %cst_13 = arith.constant 0.000000e+00 : f32
    %44 = vector.broadcast %cst_13 : f32 to vector<8x1xf32>
    %45 = arith.select %37, %43, %44 : vector<8x1xi1>, vector<8x1xf32>
    %cst_14 = arith.constant dense<0.000000e+00> : vector<1xf32>
    %46 = vector.multi_reduction <add>, %45, %cst_14 [0] : vector<8x1xf32> to vector<1xf32>
    %47 = vector.shape_cast %46 : vector<1xf32> to vector<1x1xf32>
    %cst_15 = arith.constant 1.000000e+00 : f32
    %cst_16 = arith.constant 0.000000e+00 : f32
    %48 = vector.broadcast %cst_15 : f32 to vector<8x1xf32>
    %49 = vector.broadcast %cst_16 : f32 to vector<8x1xf32>
    %50 = arith.select %37, %48, %49 : vector<8x1xi1>, vector<8x1xf32>
    %cst_17 = arith.constant dense<0.000000e+00> : vector<1xf32>
    %51 = vector.multi_reduction <add>, %50, %cst_17 [0] : vector<8x1xf32> to vector<1xf32>
    %52 = vector.shape_cast %51 : vector<1xf32> to vector<1x1xf32>
    %c0_18 = arith.constant 0 : index
    %c0_19 = arith.constant 0 : index
    %c0_20 = arith.constant 0 : index
    %53 = vector.load %arg4[%c0_18, %c0_19, %c0_20] : memref<1x1x1xf32, #tpu.memory_space<vmem>>, vector<1x1x1xf32>
    %54 = vector.shape_cast %41 : vector<1x1xf32> to vector<1x1x1xf32>
    %55 = arith.addf %53, %54 : vector<1x1x1xf32>
    %c0_21 = arith.constant 0 : index
    %c0_22 = arith.constant 0 : index
    %c0_23 = arith.constant 0 : index
    %56 = vector.load %arg4[%c0_21, %c0_22, %c0_23] : memref<1x1x1xf32, #tpu.memory_space<vmem>>, vector<1x1x1xf32>
    tpu.vector_store %arg4[%c0_21, %c0_22, %c0_23], %55 {strides = array<i32>} : memref<1x1x1xf32, #tpu.memory_space<vmem>>, vector<1x1x1xf32>,
    %c0_24 = arith.constant 0 : index
    %c0_25 = arith.constant 0 : index
    %c0_26 = arith.constant 0 : index
    %57 = vector.load %arg5[%c0_24, %c0_25, %c0_26] : memref<1x1x1xf32, #tpu.memory_space<vmem>>, vector<1x1x1xf32>
    %58 = vector.shape_cast %47 : vector<1x1xf32> to vector<1x1x1xf32>
    %59 = arith.addf %57, %58 : vector<1x1x1xf32>
    %c0_27 = arith.constant 0 : index
    %c0_28 = arith.constant 0 : index
    %c0_29 = arith.constant 0 : index
    %60 = vector.load %arg5[%c0_27, %c0_28, %c0_29] : memref<1x1x1xf32, #tpu.memory_space<vmem>>, vector<1x1x1xf32>
    tpu.vector_store %arg5[%c0_27, %c0_28, %c0_29], %59 {strides = array<i32>} : memref<1x1x1xf32, #tpu.memory_space<vmem>>, vector<1x1x1xf32>,
    %c0_30 = arith.constant 0 : index
    %c0_31 = arith.constant 0 : index
    %c0_32 = arith.constant 0 : index
    %61 = vector.load %arg6[%c0_30, %c0_31, %c0_32] : memref<1x1x1xf32, #tpu.memory_space<vmem>>, vector<1x1x1xf32>
    %62 = vector.shape_cast %52 : vector<1x1xf32> to vector<1x1x1xf32>
    %63 = arith.addf %61, %62 : vector<1x1x1xf32>
    %c0_33 = arith.constant 0 : index
    %c0_34 = arith.constant 0 : index
    %c0_35 = arith.constant 0 : index
    %64 = vector.load %arg6[%c0_33, %c0_34, %c0_35] : memref<1x1x1xf32, #tpu.memory_space<vmem>>, vector<1x1x1xf32>
    tpu.vector_store %arg6[%c0_33, %c0_34, %c0_35], %63 {strides = array<i32>} : memref<1x1x1xf32, #tpu.memory_space<vmem>>, vector<1x1x1xf32>,
    return
  }
  func.func @transform_0(%arg0: i32, %arg1: i32) -> (i32, i32) {
    %c1_i32 = arith.constant 1 : i32
    %0 = arith.muli %arg0, %c1_i32 : i32
    %1 = arith.addi %0, %arg1 : i32
    %c0_i32 = arith.constant 0 : i32
    %2 = arith.minsi %1, %c0_i32 : i32
    %c0_i32_0 = arith.constant 0 : i32
    %c0_i32_1 = arith.constant 0 : i32
    return %2, %c0_i32_0 : i32, i32
  }
  func.func @transform_1(%arg0: i32, %arg1: i32) -> (i32, i32) {
    %c1_i32 = arith.constant 1 : i32
    %0 = arith.muli %arg0, %c1_i32 : i32
    %1 = arith.addi %0, %arg1 : i32
    %c0_i32 = arith.constant 0 : i32
    %2 = arith.minsi %1, %c0_i32 : i32
    %c0_i32_0 = arith.constant 0 : i32
    %c0_i32_1 = arith.constant 0 : i32
    return %2, %c0_i32_0 : i32, i32
  }
  func.func @transform_2(%arg0: i32, %arg1: i32) -> (i32, i32, i32) {
    %c0_i32 = arith.constant 0 : i32
    %c0_i32_0 = arith.constant 0 : i32
    %c0_i32_1 = arith.constant 0 : i32
    return %arg0, %c0_i32, %c0_i32_0 : i32, i32, i32
  }
  func.func @transform_3(%arg0: i32, %arg1: i32) -> (i32, i32, i32) {
    %c0_i32 = arith.constant 0 : i32
    %c0_i32_0 = arith.constant 0 : i32
    %c0_i32_1 = arith.constant 0 : i32
    return %arg0, %c0_i32, %c0_i32_0 : i32, i32, i32
  }
  func.func @transform_4(%arg0: i32, %arg1: i32) -> (i32, i32, i32) {
    %c0_i32 = arith.constant 0 : i32
    %c0_i32_0 = arith.constant 0 : i32
    %c0_i32_1 = arith.constant 0 : i32
    return %arg0, %c0_i32, %c0_i32_0 : i32, i32, i32
  }
}

</mosaic_0001>

<llo_original>
// kernel: tpu_custom_call.1
$region0: #{tpu_custom_call.1}
  #allocation0 [shape = 'u32[]', space=smem, size = 0x4, offset = 0x4, fixed_abs, tag = 'smem constant byte address 0x4 - core index']
  #allocation1 [shape = 'u32[144,128]{1,0:T(1,128)}', space=vmem, size = 0x12000, scoped, tag = 'internal scratch']
  %s0 = inlined_call_operand.vmem [shape: f32[8,32], index: 0, kind: input, shape index: {}]
  %s1 = inlined_call_operand.vmem [shape: s32[8,1], index: 1, kind: input, shape index: {}]
  %s2 = inlined_call_operand.hbm [shape: f32[1,1,1], index: 2, kind: output, shape index: {0}]
  %s3 = inlined_call_operand.hbm [shape: f32[1,1,1], index: 3, kind: output, shape index: {1}]
  %s4 = inlined_call_operand.hbm [shape: f32[1,1,1], index: 4, kind: output, shape index: {2}]
  %5 = xla_tuple %s2, %s3, %s4
  %s6 = sld [smem:[#allocation0]]
  $region38: #{tpu_custom_call.1} parent=0
    _
  %s8 = ssub.s32 1, %s6
  %s9 = scalar_select 0, %s8, %s6
  $region1: #{tpu_custom_call.1} parent=0
    #allocation2 [shape = 'u8[512]{0}', space=vmem, size = 0x400, scoped, tag = 'output window, operand 0, single buffered']
    #allocation3 [shape = 's32[1]{0}', space=sflag, size = 0x4, scoped, tag = 'scoped memory for tpu_custom_call.1']
    #allocation4 [shape = 'u8[512]{0}', space=vmem, size = 0x400, scoped, tag = 'output window, operand 1, single buffered']
    #allocation5 [shape = 's32[1]{0}', space=sflag, size = 0x4, scoped, tag = 'scoped memory for tpu_custom_call.1']
    #allocation6 [shape = 'u8[512]{0}', space=vmem, size = 0x400, scoped, tag = 'output window, operand 2, single buffered']
    %10 = vsyncpa [#allocation3], 0
    %11 = vsyncpa [#allocation5], 0
    // Predicated region
    $region2: #{tpu_custom_call.1} parent=1 // pred_check
      _
    $region3: #{tpu_custom_call.1} parent=1 // pred_check_branch
      %13 = sbr.rel (0) target = $region5
    $region4: #{tpu_custom_call.1} parent=1 // pred_region
      %s14 = sadd.s32 0, 0
      %p15 = scmp.lt.s32.totalorder %s14, 0
      %s16 = scalar_select %p15, %s14, 0
      %p17 = scmp.lt.s32.totalorder %s16, 0
      %s18 = scalar_select %p17, %s16, 0
      %s19 = smul.addr %s18, 8
      %s20 = scalar_lea.vmem %s0, %s19
      %s21 = sadd.s32 0, 0
      %p22 = scmp.lt.s32.totalorder %s21, 0
      %s23 = scalar_select %p22, %s21, 0
    $region5: #{tpu_custom_call.1} parent=1 // pred_fallthru
      _
    // Predicated region
    $region6: #{tpu_custom_call.1} parent=1 // pred_check
      _
    $region7: #{tpu_custom_call.1} parent=1 // pred_check_branch
      %25 = sbr.rel (0) target = $region9
    $region8: #{tpu_custom_call.1} parent=1 // pred_region
      %s26 = sadd.s32 0, 0
      %p27 = scmp.lt.s32.totalorder %s26, 0
      %s28 = scalar_select %p27, %s26, 0
      %p29 = scmp.lt.s32.totalorder %s28, 0
      %s30 = scalar_select %p29, %s28, 0
      %s31 = smul.addr %s30, 8
      %s32 = scalar_lea.vmem %s1, %s31
      %s33 = sadd.s32 0, 0
      %p34 = scmp.lt.s32.totalorder %s33, 0
      %s35 = scalar_select %p34, %s33, 0
    $region9: #{tpu_custom_call.1} parent=1 // pred_fallthru
      _
    %s36 = sadd.s32 0, 0
    %p37 = scmp.lt.s32.totalorder %s36, 0
    %s38 = scalar_select %p37, %s36, 0
    %p39 = scmp.lt.s32.totalorder %s38, 0
    %s40 = scalar_select %p39, %s38, 0
    %s41 = smul.addr %s40, 8
    %s42 = scalar_lea.vmem %s0, %s41
    %s43 = sadd.s32 0, 0
    %p44 = scmp.lt.s32.totalorder %s43, 0
    %s45 = scalar_select %p44, %s43, 0
    %p46 = scmp.lt.s32.totalorder %s45, 0
    %s47 = scalar_select %p46, %s45, 0
    %s48 = smul.addr %s47, 8
    %s49 = scalar_lea.vmem %s1, %s48
    %s50 = sadd.s32 0, 0
    %p51 = scmp.lt.s32.totalorder %s50, 0
    %s52 = scalar_select %p51, %s50, 0
    %p53 = scmp.lt.s32.totalorder %s52, 0
    %s54 = scalar_select %p53, %s52, 0
    %s55 = smul.addr %s54, 8
    %s56 = scalar_lea.vmem %s0, %s55
    %s57 = sadd.s32 0, 0
    %p58 = scmp.lt.s32.totalorder %s57, 0
    %s59 = scalar_select %p58, %s57, 0
    %s60 = sadd.s32 0, 0
    %p61 = scmp.lt.s32.totalorder %s60, 0
    %s62 = scalar_select %p61, %s60, 0
    %p63 = scmp.lt.s32.totalorder %s62, 0
    %s64 = scalar_select %p63, %s62, 0
    %s65 = smul.addr %s64, 8
    %s66 = scalar_lea.vmem %s1, %s65
    %s67 = sadd.s32 0, 0
    %p68 = scmp.lt.s32.totalorder %s67, 0
    %s69 = scalar_select %p68, %s67, 0
    %p70 = scmp.eq.s32.totalorder 0, 0
    // Predicated region
    $region10: #{tpu_custom_call.1} parent=1 // pred_check
      %p71 = pneg %p70
    $region11: #{tpu_custom_call.1} parent=1 // pred_check_branch
      %73 = sbr.rel (%p71) target = $region13
    $region12: #{tpu_custom_call.1} parent=1 // pred_region
      %vm74 = vcmask 0
      %75 = vst.msk [vmem:[#allocation2] sm:$0x1] %vm74, 0.0
      %76 = vst.msk [vmem:[#allocation4] sm:$0x1] %vm74, 0.0
      %77 = vst.msk [vmem:[#allocation6] sm:$0x1] %vm74, 0.0
    $region13: #{tpu_custom_call.1} parent=1 // pred_fallthru
      _
    %v78 = vld [vmem:[%s56] sm:$0xff]
    %v79 = vld [vmem:[%s66] sm:$0xff]
    %vm80 = vcmask 261120
    %v81 = vsel %vm80, %v78, -inf
    %82 = vmax.xlane.f32.xlu0 %v81
    %v83 = vpop.xlane.xlu0 %82
    %v84 = vsub.f32 %v78, %v83
    %v85 = vmul.f32 %v84, 1.442695
    %v86 = vpow.pop %v85
    %v87 = vsel %vm80, %v86, 0.0
    %88 = vadd.xlane.f32.xlu0 %v87
    %v89 = vpop.xlane.xlu0 %88
    %v90 = vlog2.pop %v89
    %v91 = vmul.f32 %v90, 0.6931472
    %v92 = vadd.f32 %v83, %v91
    %v93 = vsel %vm80, %v78, 0.0
    %94 = vadd.xlane.f32.xlu0 %v93
    %v95 = vpop.xlane.xlu0 %94
    %v96 = vmul.f32 %v92, 32.0
    %v97 = vsub.f32 %v96, %v95
    %v98 = vlaneseq
    %v99 = vand.u32 %v98, 127
    %100 = vset.pattern.permute.xlu0 0
    %101 = vperm.xlu0 %100, %v79
    %v102 = vpop.permute.xlu0 %101
    %vm103 = vcmp.eq.s32.totalorder %v99, %v102
    %v104 = vsel %vm103, %v78, 0.0
    %v105 = vsel %vm80, %v104, 0.0
    %106 = vadd.xlane.f32.xlu0 %v105
    %v107 = vpop.xlane.xlu0 %106
    %v108 = vsub.f32 %v107, %v92
    %v109 = vlaneseq
    %v110 = vshrl.u32 %v109, 7
    %s111 = sadd.s32 0, 0
    %s112 = smul.u32 %s111, 8
    %v113 = vstv %s112
    %v114 = vadd.s32 %v113, %v110
    %vm115 = vcmp.lt.s32.totalorder %v114, 8
    %vm116 = vcmp.ne.s32.totalorder %v79, 4294967196
    %vm117 = vmand %vm115, %vm116
    %v118 = vsel %vm115, %v97, 0.0
    %v119 = vrot.slane %v118, 4
    %v120 = vadd.f32 %v118, %v119
    %v121 = vrot.slane %v120, 2
    %v122 = vadd.f32 %v120, %v121
    %v123 = vrot.slane %v122, 1
    %v124 = vadd.f32 %v122, %v123
    %v125 = vsub.f32 0.0, %v108
    %v126 = vsel %vm117, %v125, 0.0
    %vm127 = vcmask 7168
    %v128 = vsel %vm127, %v126, 0.0
    %v129 = vrot.slane %v128, 4
    %v130 = vadd.f32 %v128, %v129
    %v131 = vrot.slane %v130, 2
    %v132 = vadd.f32 %v130, %v131
    %v133 = vrot.slane %v132, 1
    %v134 = vadd.f32 %v132, %v133
    %v135 = vsel %vm117, 1.0, 0.0
    %v136 = vsel %vm127, %v135, 0.0
    %v137 = vrot.slane %v136, 4
    %v138 = vadd.f32 %v136, %v137
    %v139 = vrot.slane %v138, 2
    %v140 = vadd.f32 %v138, %v139
    %v141 = vrot.slane %v140, 1
    %v142 = vadd.f32 %v140, %v141
    %v143 = vld [vmem:[#allocation2] sm:$0x1]
    %v144 = vadd.f32 %v143, %v124
    %vm145 = vcmask 0
    %146 = vst.msk [vmem:[#allocation2] sm:$0x1] %vm145, %v144
    %v147 = vld [vmem:[#allocation4] sm:$0x1]
    %v148 = vadd.f32 %v147, %v134
    %149 = vst.msk [vmem:[#allocation4] sm:$0x1] %vm145, %v148
    %v150 = vld [vmem:[#allocation6] sm:$0x1]
    %v151 = vadd.f32 %v150, %v142
    %152 = vst.msk [vmem:[#allocation6] sm:$0x1] %vm145, %v151
    // Predicated region
    $region14: #{tpu_custom_call.1} parent=1 // pred_check
      _
    $region15: #{tpu_custom_call.1} parent=1 // pred_check_branch
      %154 = sbr.rel (0) target = $region17
    $region16: #{tpu_custom_call.1} parent=1 // pred_region
      %s156 = ssub.s32 16, 16
      %157 = vsyncadd [#allocation3], %s156
      %s159 = sshll.u32 [#allocation2], 4
      %s160 = int_to_ptr.vmem [resolvable:$true] %s159
      %162 = dma.vmem_to_hbm [thread:$0]  %s160, 16, %s2, [#allocation3]
    $region17: #{tpu_custom_call.1} parent=1 // pred_fallthru
      _
    // Predicated region
    $region18: #{tpu_custom_call.1} parent=1 // pred_check
      _
    $region19: #{tpu_custom_call.1} parent=1 // pred_check_branch
      %164 = sbr.rel (0) target = $region21
    $region20: #{tpu_custom_call.1} parent=1 // pred_region
      %s166 = ssub.s32 16, 16
      %167 = vsyncadd [#allocation5], %s166
      %s169 = sshll.u32 [#allocation4], 4
      %s170 = int_to_ptr.vmem [resolvable:$true] %s169
      %172 = dma.vmem_to_hbm [thread:$0]  %s170, 16, %s3, [#allocation5]
    $region21: #{tpu_custom_call.1} parent=1 // pred_fallthru
      _
    // Predicated region
    $region22: #{tpu_custom_call.1} parent=1 // pred_check
      _
    $region23: #{tpu_custom_call.1} parent=1 // pred_check_branch
      %174 = sbr.rel (0) target = $region25
    $region24: #{tpu_custom_call.1} parent=1 // pred_region
      %s176 = ssub.s32 16, 16
      %177 = vsyncadd [#allocation5], %s176
      %s179 = sshll.u32 [#allocation6], 4
      %s180 = int_to_ptr.vmem [resolvable:$true] %s179
      %182 = dma.vmem_to_hbm [thread:$0]  %s180, 16, %s4, [#allocation5]
    $region25: #{tpu_custom_call.1} parent=1 // pred_fallthru
      _
    // Predicated region
    $region26: #{tpu_custom_call.1} parent=1 // pred_check
      _
    $region27: #{tpu_custom_call.1} parent=1 // pred_check_branch
      %184 = sbr.rel (0) target = $region29
    $region28: #{tpu_custom_call.1} parent=1 // pred_region
      %185 = dma.done [#allocation3], 16
    $region29: #{tpu_custom_call.1} parent=1 // pred_fallthru
      _
    // Predicated region
    $region30: #{tpu_custom_call.1} parent=1 // pred_check
      _
    $region31: #{tpu_custom_call.1} parent=1 // pred_check_branch
      %187 = sbr.rel (0) target = $region33
    $region32: #{tpu_custom_call.1} parent=1 // pred_region
      %188 = dma.done [#allocation5], 16
    $region33: #{tpu_custom_call.1} parent=1 // pred_fallthru
      _
    // Predicated region
    $region34: #{tpu_custom_call.1} parent=1 // pred_check
      _
    $region35: #{tpu_custom_call.1} parent=1 // pred_check_branch
      %190 = sbr.rel (0) target = $region37
    $region36: #{tpu_custom_call.1} parent=1 // pred_region
      %191 = dma.done [#allocation5], 16
    $region37: #{tpu_custom_call.1} parent=1 // pred_fallthru
      _
    %192 = vsyncpa [#allocation3], 1
    %193 = vsyncpa [#allocation5], 1

</llo_original>
